<compile_context>
chip_gen: v7x
topology: tpu7x:2x2x1
jax: 0.10.0
libtpu: 0.0.40
codegen_flags: <defaults>
</compile_context>

<pallas_src>
import math
import jax
import jax.numpy as jnp
from jax.experimental import pallas as pl
from jax.experimental.pallas import tpu as pltpu


# --------------------------------------------------------------------------- #
# Positional-embedding table (identical to the PyTorch __init__, f32).
# --------------------------------------------------------------------------- #
def make_pos_embedding(emb_size: int, maxlen: int = 5000) -> jnp.ndarray:
    den = jnp.exp(-jnp.arange(0, emb_size, 2, dtype=jnp.float32)
                  * (math.log(10000.0) / emb_size))
    pos = jnp.arange(0, maxlen, dtype=jnp.float32).reshape(maxlen, 1)
    angles = pos * den                                 # (maxlen, emb_size//2)
    pe = jnp.zeros((maxlen, emb_size), dtype=jnp.float32)
    pe = pe.at[:, 0::2].set(jnp.sin(angles))
    pe = pe.at[:, 1::2].set(jnp.cos(angles))
    return pe


def prepare_pos_embedding(pos_embedding: jnp.ndarray, seq: int, dtype) -> jnp.ndarray:
    """Slice + cast ONCE at model init so the per-call path does zero extra XLA ops."""
    return pos_embedding[:seq, :].astype(dtype)


# --------------------------------------------------------------------------- #
# Kernel body (shared by both layouts; relies on numpy broadcasting rules):
#   flattened: x (row_tile, lane_tile)    + pe (1, lane_tile)
#   3-D:       x (1, seq_tile, emb)       + pe (seq_tile, emb)
# --------------------------------------------------------------------------- #
def _pe_add_kernel(x_ref, pe_ref, o_ref):
    o_ref[...] = x_ref[...] + pe_ref[...]


# --------------------------------------------------------------------------- #
# Generation-aware defaults.
# --------------------------------------------------------------------------- #
def _hw_defaults():
    """Return (block_bytes, vmem_limit_bytes) tuned per TPU generation."""
    vmem = 0
    try:
        vmem = int(getattr(pltpu.get_tpu_info(), "vmem_capacity_bytes", 0) or 0)
    except Exception:
        vmem = 0
    if vmem and vmem <= (64 << 20):
        # v7x: only 64 MiB VMEM per TC, but ~3.2 TB/s HBM -> bigger blocks to
        # amortize the ~0.35 us per-grid-step overhead.  Footprint:
        # 2*x + 2*out + 2*pe blocks ~= 4.25 * block_bytes  -> ~26 MiB < 44 MiB.
        return 6 << 20, 44 << 20
    # v5e / v6e (128 MiB physical VMEM) or unknown backend: 4 MiB blocks are at
    # the measured roofline knee; 48 MiB scoped limit leaves ample headroom.
    return 4 << 20, 48 << 20


# --------------------------------------------------------------------------- #
# Tiling choices.
# --------------------------------------------------------------------------- #
def _flat_tiles(batch, lanes, itemsize, block_bytes):
    """Tiles for the lane-dense flattened (batch, seq*emb) layout, or None if
    that layout cannot honor the per-block byte budget."""
    sub = max(8, 32 // itemsize)                # 8 f32, 16 bf16, 32 int8/fp8
    row_tile = sub if batch >= sub else batch   # full-extent fallback is legal
    if lanes % 128 != 0:
        # Only usable when one full-extent lane block respects the budget.
        if row_tile * lanes * itemsize > block_bytes:
            return None
        lane_tile = lanes
    else:
        budget_lanes = max(128, block_bytes // (row_tile * itemsize))
        lane_tile = min((budget_lanes // 128) * 128, lanes)

    grid_lanes = pl.cdiv(lanes, lane_tile)
    grid_rows = pl.cdiv(batch, row_tile)
    # v7x megacore: make sure a "parallel" axis has >= 2 steps whenever the
    # tensor is big enough that leaving one TensorCore idle costs bandwidth.
    if (grid_lanes * grid_rows == 1
            and batch * lanes * itemsize > (2 << 20)
            and lanes % 256 == 0):
        lane_tile = max(128, ((lane_tile // 2) // 128) * 128)
        grid_lanes = pl.cdiv(lanes, lane_tile)

    return row_tile, lane_tile, (grid_lanes, grid_rows)


def _tiles_3d(seq, emb, itemsize, block_bytes):
    """Tiles for the (batch, seq, emb) fallback layout (emb kept full-extent)."""
    sub = max(8, 32 // itemsize)
    budget_rows = max(sub, block_bytes // max(1, emb * itemsize))
    seq_tile = (budget_rows // sub) * sub
    if seq_tile >= seq or seq <= sub:
        seq_tile = seq                           # full extent is always legal
    return seq_tile


# --------------------------------------------------------------------------- #
# Public wrapper.
# --------------------------------------------------------------------------- #
def positional_encoding(token_embedding: jnp.ndarray,
                        pos_embedding: jnp.ndarray,
                        *,
                        block_bytes: int | None = None,
                        vmem_limit_bytes: int | None = None,
                        donate_input: bool = False) -> jnp.ndarray:
    """token_embedding: (batch, seq, emb).
    pos_embedding: (maxlen, emb) f32 table OR a prepared (seq, emb) table in
    token_embedding.dtype (see prepare_pos_embedding; prepared = zero extra ops).
    donate_input=True aliases the output onto the input buffer — only use when
    token_embedding is dead after this call."""
    batch, seq, emb = token_embedding.shape
    assert pos_embedding.shape[0] >= seq and pos_embedding.shape[1] == emb, (
        f"pos_embedding {pos_embedding.shape} incompatible with seq={seq}, emb={emb}")

    dtype = token_embedding.dtype
    itemsize = jnp.dtype(dtype).itemsize
    default_bb, default_vl = _hw_defaults()
    block_bytes = default_bb if block_bytes is None else block_bytes
    vmem_limit_bytes = default_vl if vmem_limit_bytes is None else vmem_limit_bytes

    # No-op if the caller passed a prepared table (recommended).
    pe = pos_embedding
    if pe.shape[0] != seq or pe.dtype != dtype:
        pe = pe[:seq, :].astype(dtype)

    compiler_params = pltpu.CompilerParams(
        dimension_semantics=("parallel", "parallel"),
        vmem_limit_bytes=vmem_limit_bytes)
    io_alias = {0: 0} if donate_input else {}

    lanes = seq * emb
    flat = _flat_tiles(batch, lanes, itemsize, block_bytes)

    if flat is not None:
        # Lane-dense flattened layout: x -> (batch, seq*emb), pe -> (1, seq*emb).
        row_tile, lane_tile, grid = flat          # grid = (lane blocks OUTER, row blocks INNER)
        x2 = token_embedding.reshape(batch, lanes)        # contiguous -> cheap
        pe2 = pe.reshape(1, lanes)
        out2 = pl.pallas_call(
            _pe_add_kernel,
            out_shape=jax.ShapeDtypeStruct((batch, lanes), dtype),
            grid_spec=pltpu.PrefetchScalarGridSpec(
                num_scalar_prefetch=0,
                grid=grid,
                in_specs=[
                    pl.BlockSpec((row_tile, lane_tile), lambda j, i: (i, j)),
                    # pe block constant across the inner row axis -> resident in VMEM.
                    pl.BlockSpec((1, lane_tile), lambda j, i: (0, j)),
                ],
                out_specs=pl.BlockSpec((row_tile, lane_tile), lambda j, i: (i, j)),
            ),
            compiler_params=compiler_params,
            input_output_aliases=io_alias,
        )(x2, pe2)
        return out2.reshape(batch, seq, emb)

    # Fallback: (batch, seq, emb) tiling for shapes whose flattened lane count is
    # neither a multiple of 128 nor small enough for one budget-sized block.
    seq_tile = _tiles_3d(seq, emb, itemsize, block_bytes)
    grid = (pl.cdiv(seq, seq_tile), batch)        # seq blocks OUTER -> pe resident over batch
    return pl.pallas_call(
        _pe_add_kernel,
        out_shape=jax.ShapeDtypeStruct((batch, seq, emb), dtype),
        grid_spec=pltpu.PrefetchScalarGridSpec(
            num_scalar_prefetch=0,
            grid=grid,
            in_specs=[
                pl.BlockSpec((1, seq_tile, emb), lambda sj, bi: (bi, sj, 0)),
                pl.BlockSpec((seq_tile, emb), lambda sj, bi: (sj, 0)),
            ],
            out_specs=pl.BlockSpec((1, seq_tile, emb), lambda sj, bi: (bi, sj, 0)),
        ),
        compiler_params=compiler_params,
        input_output_aliases=io_alias,
    )(token_embedding, pe)


# --------------------------------------------------------------------------- #
# Tests.
# --------------------------------------------------------------------------- #
if __name__ == "__main__":
    key = jax.random.PRNGKey(0)

    # --- 1) small shapes matching the module's forward (prepared-pe fast path) ---
    batch, seq, emb = 2, 8, 32
    maxlen = 64
    x = jax.random.normal(key, (batch, seq, emb), dtype=jnp.float32)
    pe_table = make_pos_embedding(emb, maxlen)
    pe_ready = prepare_pos_embedding(pe_table, seq, x.dtype)   # once, at "model init"

    out = jax.block_until_ready(positional_encoding(x, pe_ready))
    ref = x + pe_table[:seq, :][None, :, :]
    assert out.shape == (batch, seq, emb)
    assert jnp.allclose(out, ref, atol=1e-6), "mismatch vs reference (small)"

    # --- 2) multi-block lane tiling (f32, forced small blocks) -------------------
    b2, s2, e2 = 8, 64, 128
    x2 = jax.random.normal(jax.random.PRNGKey(1), (b2, s2, e2), dtype=jnp.float32)
    pe2 = make_pos_embedding(e2, 256)
    out2 = jax.block_until_ready(
        positional_encoding(x2, pe2, block_bytes=64 * 1024))   # forces >1 lane block
    ref2 = x2 + pe2[:s2, :][None, :, :]
    assert jnp.allclose(out2, ref2, atol=1e-6), "mismatch vs reference (tiled)"

    # --- 3) bf16: dtype-aware sublane tiling + prepared pe -----------------------
    b3, s3, e3 = 16, 32, 64
    x3 = jax.random.normal(jax.random.PRNGKey(2), (b3, s3, e3), dtype=jnp.bfloat16)
    pe3_tab = make_pos_embedding(e3, 128)
    pe3 = prepare_pos_embedding(pe3_tab, s3, jnp.bfloat16)
    out3 = jax.block_until_ready(positional_encoding(x3, pe3))
    ref3 = x3 + pe3[None, :, :]                   # same bf16 add as the kernel
    assert jnp.allclose(out3.astype(jnp.float32), ref3.astype(jnp.float32),
                        atol=1e-2), "mismatch vs reference (bf16)"

    # --- 4) megacore split: single-block-sized input still gets a 2-step grid ----
    b4, s4, e4 = 8, 256, 512
    x4 = jax.random.normal(jax.random.PRNGKey(3), (b4, s4, e4), dtype=jnp.float32)
    pe4 = make_pos_embedding(e4, 512)
    out4 = jax.block_until_ready(positional_encoding(x4, pe4))
    ref4 = x4 + pe4[:s4, :][None, :, :]
    assert jnp.allclose(out4, ref4, atol=1e-6), "mismatch vs reference (megacore)"

    # --- 5) fallback 3-D path: non-128-multiple seq*emb over tiny block budget ---
    b5, s5, e5 = 2, 40, 36
    x5 = jax.random.normal(jax.random.PRNGKey(4), (b5, s5, e5), dtype=jnp.float32)
    pe5 = make_pos_embedding(e5, 64)
    out5 = jax.block_until_ready(
        positional_encoding(x5, pe5, block_bytes=4096))        # forces 3-D fallback
    ref5 = x5 + pe5[:s5, :][None, :, :]
    assert jnp.allclose(out5, ref5, atol=1e-6), "mismatch vs reference (3-D fallback)"

    print("KERNEL_OK")
</pallas_src>

<mosaic_0001>
module attributes {stable_mosaic.version = 11 : i64} {
  func.func @_pe_add_kernel(%arg0: i32, %arg1: i32, %arg2: memref<2x256xf32, #tpu.memory_space<vmem>>, %arg3: memref<1x256xf32, #tpu.memory_space<vmem>>, %arg4: memref<2x256xf32, #tpu.memory_space<vmem>>) attributes {dimension_semantics = [#tpu.dimension_semantics<parallel>, #tpu.dimension_semantics<parallel>], iteration_bounds = array<i64: 1, 1>, scalar_prefetch = 0 : i64, scratch_operands = 0 : i64, tpu.core_type = #tpu.core_type<tc>, window_params = [{transform_indices = @transform_0, window_bounds = array<i64: 2, 256>}, {transform_indices = @transform_1, window_bounds = array<i64: 1, 256>}, {transform_indices = @transform_2, window_bounds = array<i64: 2, 256>}]} {
    %c0 = arith.constant 0 : index
    %c0_0 = arith.constant 0 : index
    %0 = vector.load %arg2[%c0, %c0_0] : memref<2x256xf32, #tpu.memory_space<vmem>>, vector<2x256xf32>
    %c0_1 = arith.constant 0 : index
    %c0_2 = arith.constant 0 : index
    %1 = vector.load %arg3[%c0_1, %c0_2] : memref<1x256xf32, #tpu.memory_space<vmem>>, vector<1x256xf32>
    %2 = vector.broadcast %1 : vector<1x256xf32> to vector<2x256xf32>
    %3 = arith.addf %0, %2 : vector<2x256xf32>
    %c0_3 = arith.constant 0 : index
    %c0_4 = arith.constant 0 : index
    %4 = vector.load %arg4[%c0_3, %c0_4] : memref<2x256xf32, #tpu.memory_space<vmem>>, vector<2x256xf32>
    tpu.vector_store %arg4[%c0_3, %c0_4], %3 {strides = array<i32>} : memref<2x256xf32, #tpu.memory_space<vmem>>, vector<2x256xf32>,
    return
  }
  func.func @transform_0(%arg0: i32, %arg1: i32) -> (i32, i32) {
    %c0_i32 = arith.constant 0 : i32
    return %arg1, %arg0 : i32, i32
  }
  func.func @transform_1(%arg0: i32, %arg1: i32) -> (i32, i32) {
    %c0_i32 = arith.constant 0 : i32
    %c0_i32_0 = arith.constant 0 : i32
    return %c0_i32, %arg0 : i32, i32
  }
  func.func @transform_2(%arg0: i32, %arg1: i32) -> (i32, i32) {
    %c0_i32 = arith.constant 0 : i32
    return %arg1, %arg0 : i32, i32
  }
}

</mosaic_0001>

<llo_original>
// kernel: tpu_custom_call.1
$region0: #{tpu_custom_call.1}
  #allocation0 [shape = 'u32[]', space=smem, size = 0x4, offset = 0x4, fixed_abs, tag = 'smem constant byte address 0x4 - core index']
  #allocation1 [shape = 'u32[144,128]{1,0:T(1,128)}', space=vmem, size = 0x12000, scoped, tag = 'internal scratch']
  %s0 = inlined_call_operand.hbm [shape: f32[2,256], index: 0, kind: input, shape index: {}]
  %s1 = inlined_call_operand.vmem [shape: f32[1,256], index: 1, kind: input, shape index: {}]
  %s2 = inlined_call_operand.hbm [shape: f32[2,256], index: 2, kind: output, shape index: {}]
  %s3 = sld [smem:[#allocation0]]
  $region22: #{tpu_custom_call.1} parent=0
    _
  %s5 = ssub.s32 1, %s3
  %s6 = scalar_select 0, %s5, %s3
  $region1: #{tpu_custom_call.1} parent=0
    #allocation2 [shape = 'u8[2048]{0}', space=vmem, size = 0x800, scoped, tag = 'input window, operand 0, single buffered']
    #allocation3 [shape = 's32[1]{0}', space=sflag, size = 0x4, scoped, tag = 'scoped memory for tpu_custom_call.1']
    #allocation4 [shape = 's32[1]{0}', space=sflag, size = 0x4, scoped, tag = 'scoped memory for tpu_custom_call.1']
    #allocation5 [shape = 'u8[2048]{0}', space=vmem, size = 0x800, scoped, tag = 'output window, operand 0, single buffered']
    %7 = vsyncpa [#allocation3], 0
    %8 = vsyncpa [#allocation4], 0
    // Predicated region
    $region2: #{tpu_custom_call.1} parent=1 // pred_check
      _
    $region3: #{tpu_custom_call.1} parent=1 // pred_check_branch
      %10 = sbr.rel (0) target = $region5
    $region4: #{tpu_custom_call.1} parent=1 // pred_region
      %s12 = ssub.s32 64, 64
      %13 = vsyncadd [#allocation3], %s12
      %s15 = sshll.u32 [#allocation2], 4
      %s16 = int_to_ptr.vmem [resolvable:$true] %s15
      %18 = dma.hbm_to_vmem [thread:$0]  %s0, 64, %s16, [#allocation3]
    $region5: #{tpu_custom_call.1} parent=1 // pred_fallthru
      _
    // Predicated region
    $region6: #{tpu_custom_call.1} parent=1 // pred_check
      _
    $region7: #{tpu_custom_call.1} parent=1 // pred_check_branch
      %20 = sbr.rel (0) target = $region9
    $region8: #{tpu_custom_call.1} parent=1 // pred_region
      _
    $region9: #{tpu_custom_call.1} parent=1 // pred_fallthru
      _
    // Predicated region
    $region10: #{tpu_custom_call.1} parent=1 // pred_check
      _
    $region11: #{tpu_custom_call.1} parent=1 // pred_check_branch
      %22 = sbr.rel (0) target = $region13
    $region12: #{tpu_custom_call.1} parent=1 // pred_region
      %23 = dma.done [#allocation3], 64
    $region13: #{tpu_custom_call.1} parent=1 // pred_fallthru
      _
    %v24 = vld [vmem:[#allocation2] sm:$0xf]
    %v25 = vld [vmem:[%s1] sm:$0x3]
    %v27 = vlaneseq
    %v28 = vshrl.u32 %v27, 7
    %v29 = vsub.s32 0, %v28
    %v30 = vrot.slane %v25, %v29
    %v31 = vlaneseq
    %v32 = vshrl.u32 %v31, 7
    %v33 = vsub.s32 1, %v32
    %v34 = vrot.slane %v25, %v33
    %v35 = vcombine.low %v30, %v34
    %v37 = vunpack.c.l.s4 1983009808
    %v38 = vunpack.c.0.s8 %v37
    %v39 = vlaneseq
    %v40 = vshrl.u32 %v39, 7
    %v41 = vsub.s32 %v38, %v40
    %v42 = vrot.slane %v35, %v41
    %v44 = vadd.f32 %v24, %v42
    %45 = vst [vmem:[#allocation5] sm:$0xf] %v44
    // Predicated region
    $region14: #{tpu_custom_call.1} parent=1 // pred_check
      _
    $region15: #{tpu_custom_call.1} parent=1 // pred_check_branch
      %47 = sbr.rel (0) target = $region17
    $region16: #{tpu_custom_call.1} parent=1 // pred_region
      %s49 = ssub.s32 64, 64
      %50 = vsyncadd [#allocation4], %s49
      %s52 = sshll.u32 [#allocation5], 4
      %s53 = int_to_ptr.vmem [resolvable:$true] %s52
      %55 = dma.vmem_to_hbm [thread:$0]  %s53, 64, %s2, [#allocation4]
    $region17: #{tpu_custom_call.1} parent=1 // pred_fallthru
      _
    // Predicated region
    $region18: #{tpu_custom_call.1} parent=1 // pred_check
      _
    $region19: #{tpu_custom_call.1} parent=1 // pred_check_branch
      %57 = sbr.rel (0) target = $region21
    $region20: #{tpu_custom_call.1} parent=1 // pred_region
      %58 = dma.done [#allocation4], 64
    $region21: #{tpu_custom_call.1} parent=1 // pred_fallthru
      _
    %59 = vsyncpa [#allocation3], 1
    %60 = vsyncpa [#allocation4], 1

</llo_original>
